<compile_context>
chip_gen: v7x
topology: tpu7x:2x2x1
jax: 0.10.0
libtpu: 0.0.40
codegen_flags: <defaults>
</compile_context>

<pallas_src>
import functools

import jax
import jax.numpy as jnp
from jax.experimental import pallas as pl
from jax.experimental.pallas import tpu as pltpu

_LANE = 128
_MAX_BATCH_TILE = 1024  # rows per grid step; small enough for v7x's 64 MiB VMEM


def _round_up(x, m):
    return (x + m - 1) // m * m


def _linear_eval_kernel(x_ref, w_ref, b_ref, o_ref):
    # y = x @ W + b   (MXU matmul, f32 accumulate).  Dropout is identity in eval mode.
    y = jnp.dot(x_ref[...], w_ref[...], preferred_element_type=jnp.float32)
    y = y + b_ref[...]  # (1, C_pad) broadcasts over the batch tile
    o_ref[...] = y.astype(o_ref.dtype)


def _linear_train_kernel(x_ref, w_ref, b_ref, bits_ref, o_ref, *, threshold, scale):
    y = jnp.dot(x_ref[...], w_ref[...], preferred_element_type=jnp.float32)
    y = y + b_ref[...]
    # Inverted dropout with keep-prob (1 - p): one uint32 compare per element.
    keep = bits_ref[...] >= jnp.uint32(threshold)
    o_ref[...] = jnp.where(keep, y * scale, 0.0).astype(o_ref.dtype)


def linear_classifier_forward(x, weight_t, bias, *, training=False, rng_key=None, p=0.5):
    """Forward pass of LinearClassifier.

    x:        (B, F)  float32, F = num_class * model_num
    weight_t: (F, C)  float32  (PyTorch fc.weight transposed)
    bias:     (C,)    float32
    """
    B, F = x.shape
    C = weight_t.shape[1]
    dtype = x.dtype

    # Lane-dense padding of the class axis -> unmasked vector stores / full-line writeback.
    C_pad = _round_up(max(C, _LANE), _LANE)
    w_p = jnp.zeros((F, C_pad), dtype).at[:, :C].set(weight_t.astype(dtype))
    b_p = jnp.zeros((1, C_pad), dtype).at[:, :C].set(bias.reshape(1, C).astype(dtype))

    # Batch tiling: single full block for small B, else 1024-row tiles (multiple of 8).
    TB = B if B <= _MAX_BATCH_TILE else _MAX_BATCH_TILE
    grid = (pl.cdiv(B, TB),)

    compiler_params = pltpu.CompilerParams(
        dimension_semantics=("parallel",),    # shard batch tiles across TCs (v7x megacore)
        vmem_limit_bytes=32 * 1024 * 1024,    # explicit; tiles fit with large headroom
    )

    x_spec = pl.BlockSpec((TB, F), lambda i: (i, 0))
    w_spec = pl.BlockSpec((F, C_pad), lambda i: (0, 0))      # resident across grid steps
    b_spec = pl.BlockSpec((1, C_pad), lambda i: (0, 0))      # resident across grid steps
    o_spec = pl.BlockSpec((TB, C_pad), lambda i: (i, 0))
    out_shape = jax.ShapeDtypeStruct((B, C_pad), dtype)

    flops = 2 * B * F * C_pad
    bytes_accessed = 4 * (B * F + F * C_pad + B * C_pad)

    if (not training) or p <= 0.0:
        out = pl.pallas_call(
            _linear_eval_kernel,
            out_shape=out_shape,
            grid=grid,
            in_specs=[x_spec, w_spec, b_spec],
            out_specs=o_spec,
            compiler_params=compiler_params,
            cost_estimate=pl.CostEstimate(
                flops=flops, transcendentals=0, bytes_accessed=bytes_accessed),
        )(x, w_p, b_p)
        return out[:, :C]

    if p >= 1.0:
        raise ValueError("dropout p must be < 1.0 (scale 1/(1-p) would divide by zero)")
    if rng_key is None:
        rng_key = jax.random.PRNGKey(0)

    # Raw uniform uint32 bits for the mask; keep element iff bits >= round(p * 2**32).
    bits = jax.random.bits(rng_key, (B, C_pad), dtype=jnp.uint32)
    threshold = min(int(round(p * 2.0 ** 32)), 2 ** 32 - 1)
    scale = 1.0 / (1.0 - p)
    mask_spec = pl.BlockSpec((TB, C_pad), lambda i: (i, 0))

    out = pl.pallas_call(
        functools.partial(_linear_train_kernel, threshold=threshold, scale=scale),
        out_shape=out_shape,
        grid=grid,
        in_specs=[x_spec, w_spec, b_spec, mask_spec],
        out_specs=o_spec,
        compiler_params=compiler_params,
        cost_estimate=pl.CostEstimate(
            flops=flops, transcendentals=0,
            bytes_accessed=bytes_accessed + 4 * B * C_pad),
    )(x, w_p, b_p, bits)
    return out[:, :C]


def init_params(key, num_class, model_num):
    """Deterministic init matching nn.Linear's default: U(-1/sqrt(fan_in), 1/sqrt(fan_in))."""
    in_features = num_class * model_num
    kw, kb = jax.random.split(key)
    bound = 1.0 / jnp.sqrt(jnp.float32(in_features))
    # Stored already transposed: (in_features, num_class)
    weight_t = jax.random.uniform(
        kw, (in_features, num_class), jnp.float32, minval=-bound, maxval=bound)
    bias = jax.random.uniform(
        kb, (num_class,), jnp.float32, minval=-bound, maxval=bound)
    return weight_t, bias


if __name__ == "__main__":
    num_class = 10
    model_num = 4
    batch = 8

    key = jax.random.PRNGKey(0)
    kx, kp, kd, kx2 = jax.random.split(key, 4)

    # x = concatenated per-model probability distributions: (batch, num_class * model_num)
    x = jax.random.uniform(kx, (batch, num_class * model_num), jnp.float32)
    weight_t, bias = init_params(kp, num_class, model_num)

    # --- eval mode (dropout = identity), single batch block ---
    out = jax.block_until_ready(linear_classifier_forward(x, weight_t, bias, training=False))
    ref = x @ weight_t + bias
    assert out.shape == (batch, num_class)
    assert jnp.allclose(out, ref, atol=1e-5, rtol=1e-5), "eval mismatch vs reference"

    # --- eval mode with a batch large enough to exercise the batch grid (2 tiles) ---
    batch2 = 2 * _MAX_BATCH_TILE
    x2 = jax.random.uniform(kx2, (batch2, num_class * model_num), jnp.float32)
    out2 = jax.block_until_ready(linear_classifier_forward(x2, weight_t, bias, training=False))
    ref2 = x2 @ weight_t + bias
    assert out2.shape == (batch2, num_class)
    assert jnp.allclose(out2, ref2, atol=1e-4, rtol=1e-4), "tiled eval mismatch vs reference"

    # --- train mode (inverted dropout, p=0.5): every element is 0 or 2 * ref ---
    out_tr = jax.block_until_ready(
        linear_classifier_forward(x, weight_t, bias, training=True, rng_key=kd, p=0.5))
    assert out_tr.shape == (batch, num_class)
    ok = jnp.isclose(out_tr, 0.0, atol=1e-6) | jnp.isclose(out_tr, 2.0 * ref, atol=1e-5, rtol=1e-5)
    assert bool(jnp.all(ok)), "train-mode dropout output is not in {0, 2*y}"

    print("KERNEL_OK")
</pallas_src>

<mosaic_0001>
module attributes {stable_mosaic.version = 11 : i64} {
  func.func @_linear_eval_kernel(%arg0: i32, %arg1: memref<8x40xf32, #tpu.memory_space<vmem>>, %arg2: memref<40x128xf32, #tpu.memory_space<vmem>>, %arg3: memref<1x128xf32, #tpu.memory_space<vmem>>, %arg4: memref<8x128xf32, #tpu.memory_space<vmem>>) attributes {dimension_semantics = [#tpu.dimension_semantics<parallel>], iteration_bounds = array<i64: 1>, scalar_prefetch = 0 : i64, scratch_operands = 0 : i64, tpu.core_type = #tpu.core_type<tc>, window_params = [{transform_indices = @transform_0, window_bounds = array<i64: 8, 40>}, {pipeline_mode = #tpu.pipeline_mode<synchronous>, transform_indices = @transform_1, window_bounds = array<i64: 40, 128>}, {pipeline_mode = #tpu.pipeline_mode<synchronous>, transform_indices = @transform_2, window_bounds = array<i64: 1, 128>}, {transform_indices = @transform_3, window_bounds = array<i64: 8, 128>}]} {
    %c0 = arith.constant 0 : index
    %c0_0 = arith.constant 0 : index
    %0 = vector.load %arg1[%c0, %c0_0] : memref<8x40xf32, #tpu.memory_space<vmem>>, vector<8x40xf32>
    %c0_1 = arith.constant 0 : index
    %c0_2 = arith.constant 0 : index
    %1 = vector.load %arg2[%c0_1, %c0_2] : memref<40x128xf32, #tpu.memory_space<vmem>>, vector<40x128xf32>
    %cst = arith.constant dense<0.000000e+00> : vector<8x128xf32>
    %2 = tpu.matmul %0, %1, %cst {dimension_numbers = #tpu.dot_dimension_numbers<[1], [0], [0], [1], [0, 0, 1, 1], [], []>} : vector<8x40xf32>, vector<40x128xf32>, vector<8x128xf32> -> vector<8x128xf32>
    %c0_3 = arith.constant 0 : index
    %c0_4 = arith.constant 0 : index
    %3 = vector.load %arg3[%c0_3, %c0_4] : memref<1x128xf32, #tpu.memory_space<vmem>>, vector<1x128xf32>
    %4 = vector.broadcast %3 : vector<1x128xf32> to vector<8x128xf32>
    %5 = arith.addf %2, %4 : vector<8x128xf32>
    %c0_5 = arith.constant 0 : index
    %c0_6 = arith.constant 0 : index
    %6 = vector.load %arg4[%c0_5, %c0_6] : memref<8x128xf32, #tpu.memory_space<vmem>>, vector<8x128xf32>
    tpu.vector_store %arg4[%c0_5, %c0_6], %5 {strides = array<i32>} : memref<8x128xf32, #tpu.memory_space<vmem>>, vector<8x128xf32>,
    return
  }
  func.func @transform_0(%arg0: i32) -> (i32, i32) {
    %c0_i32 = arith.constant 0 : i32
    %c0_i32_0 = arith.constant 0 : i32
    return %arg0, %c0_i32 : i32, i32
  }
  func.func @transform_1(%arg0: i32) -> (i32, i32) {
    %c0_i32 = arith.constant 0 : i32
    %c0_i32_0 = arith.constant 0 : i32
    %c0_i32_1 = arith.constant 0 : i32
    return %c0_i32, %c0_i32_0 : i32, i32
  }
  func.func @transform_2(%arg0: i32) -> (i32, i32) {
    %c0_i32 = arith.constant 0 : i32
    %c0_i32_0 = arith.constant 0 : i32
    %c0_i32_1 = arith.constant 0 : i32
    return %c0_i32, %c0_i32_0 : i32, i32
  }
  func.func @transform_3(%arg0: i32) -> (i32, i32) {
    %c0_i32 = arith.constant 0 : i32
    %c0_i32_0 = arith.constant 0 : i32
    return %arg0, %c0_i32 : i32, i32
  }
}

</mosaic_0001>

<llo_original>
// kernel: tpu_custom_call.1
$region0: #{tpu_custom_call.1}
  #allocation0 [shape = 'u32[]', space=smem, size = 0x4, offset = 0x4, fixed_abs, tag = 'smem constant byte address 0x4 - core index']
  #allocation1 [shape = 'u32[144,128]{1,0:T(1,128)}', space=vmem, size = 0x12000, scoped, tag = 'internal scratch']
  %s0 = inlined_call_operand.hbm [shape: f32[8,40], index: 0, kind: input, shape index: {}]
  %s1 = inlined_call_operand.hbm [shape: f32[40,128], index: 1, kind: input, shape index: {}]
  %s2 = inlined_call_operand.vmem [shape: f32[1,128], index: 2, kind: input, shape index: {}]
  %s3 = inlined_call_operand.hbm [shape: f32[8,128], index: 3, kind: output, shape index: {}]
  %s4 = sld [smem:[#allocation0]]
  $region30: #{tpu_custom_call.1} parent=0
    _
  %s6 = ssub.s32 1, %s4
  %s7 = scalar_select 0, %s6, %s4
  $region1: #{tpu_custom_call.1} parent=0
    #allocation2 [shape = 'u8[4096]{0}', space=vmem, size = 0x1000, scoped, tag = 'input window, operand 0, single buffered']
    #allocation3 [shape = 's32[1]{0}', space=sflag, size = 0x4, scoped, tag = 'scoped memory for tpu_custom_call.1']
    #allocation4 [shape = 's32[1]{0}', space=sflag, size = 0x4, scoped, tag = 'scoped memory for tpu_custom_call.1']
    #allocation5 [shape = 'u8[20480]{0}', space=vmem, size = 0x5000, scoped, tag = 'input window, operand 1, single buffered']
    #allocation6 [shape = 's32[1]{0}', space=sflag, size = 0x4, scoped, tag = 'scoped memory for tpu_custom_call.1']
    #allocation7 [shape = 'u8[4096]{0}', space=vmem, size = 0x1000, scoped, tag = 'output window, operand 0, single buffered']
    %8 = vsyncpa [#allocation3], 0
    %9 = vsyncpa [#allocation6], 0
    %10 = vsyncpa [#allocation4], 0
    // Predicated region
    $region2: #{tpu_custom_call.1} parent=1 // pred_check
      _
    $region3: #{tpu_custom_call.1} parent=1 // pred_check_branch
      %12 = sbr.rel (0) target = $region5
    $region4: #{tpu_custom_call.1} parent=1 // pred_region
      %s14 = ssub.s32 128, 128
      %15 = vsyncadd [#allocation3], %s14
      %s17 = sshll.u32 [#allocation2], 4
      %s18 = int_to_ptr.vmem [resolvable:$true] %s17
      %20 = dma.hbm_to_vmem [thread:$0]  %s0, 128, %s18, [#allocation3]
    $region5: #{tpu_custom_call.1} parent=1 // pred_fallthru
      _
    // Predicated region
    $region6: #{tpu_custom_call.1} parent=1 // pred_check
      _
    $region7: #{tpu_custom_call.1} parent=1 // pred_check_branch
      %22 = sbr.rel (0) target = $region9
    $region8: #{tpu_custom_call.1} parent=1 // pred_region
      %s24 = ssub.s32 640, 640
      %25 = vsyncadd [#allocation6], %s24
      %s26 = sshll.u32 [#allocation5], 4
      %s27 = int_to_ptr.vmem [resolvable:$true] %s26
      %32 = dma.hbm_to_vmem [thread:$0]  %s1, 640, %s27, [#allocation6], 128, 128, 8
    $region9: #{tpu_custom_call.1} parent=1 // pred_fallthru
      _
    // Predicated region
    $region10: #{tpu_custom_call.1} parent=1 // pred_check
      _
    $region11: #{tpu_custom_call.1} parent=1 // pred_check_branch
      %34 = sbr.rel (0) target = $region13
    $region12: #{tpu_custom_call.1} parent=1 // pred_region
      _
    $region13: #{tpu_custom_call.1} parent=1 // pred_fallthru
      _
    // Predicated region
    $region14: #{tpu_custom_call.1} parent=1 // pred_check
      _
    $region15: #{tpu_custom_call.1} parent=1 // pred_check_branch
      %36 = sbr.rel (0) target = $region17
    $region16: #{tpu_custom_call.1} parent=1 // pred_region
      %37 = dma.done [#allocation3], 128
    $region17: #{tpu_custom_call.1} parent=1 // pred_fallthru
      _
    // Predicated region
    $region18: #{tpu_custom_call.1} parent=1 // pred_check
      _
    $region19: #{tpu_custom_call.1} parent=1 // pred_check_branch
      %39 = sbr.rel (0) target = $region21
    $region20: #{tpu_custom_call.1} parent=1 // pred_region
      %40 = dma.done [#allocation6], 640
    $region21: #{tpu_custom_call.1} parent=1 // pred_fallthru
      _
    %v41 = vld [vmem:[#allocation2] sm:$0xff]
    %v42 = vld [vmem:[#allocation5] sm:$0xff]
    %v43 = vld [vmem:[#allocation5 + $0x8] sm:$0xff]
    %v44 = vld [vmem:[#allocation5 + $0x10] sm:$0xff]
    %v45 = vld [vmem:[#allocation5 + $0x18] sm:$0xff]
    %v46 = vld [vmem:[#allocation5 + $0x20] sm:$0xff]
    %v47 = vld [vmem:[%s2] sm:$0x1]
    %v49 = vlaneseq
    %v50 = vshrl.u32 %v49, 7
    %v51 = vsub.s32 0, %v50
    %v52 = vrot.slane %v47, %v51
    %vm54 = vcmask 326656
    %v56 = vsel %vm54, %v41, 0
    %58 = vmatprep.subr.mxu0 0.0
    %59 = vmatpush1.msra.mxu0 %v42
    %60 = vmatprep.subr.mxu0 0.0
    %61 = vmatpush1.msra.mxu0 %v43
    %62 = vmatprep.subr.mxu0 0.0
    %63 = vmatpush1.msra.mxu0 %v44
    %64 = vmatprep.subr.mxu0 0.0
    %65 = vmatpush1.msra.mxu0 %v45
    %66 = vmatprep.subr.mxu0 0.0
    %67 = vmatpush1.msra.mxu0 %v46
    %68 = vmatprep.subr.mxu0 0.0
    %69 = vmatpush1.msra.mxu0 0.0
    %70 = vmatprep.subr.mxu0 0.0
    %71 = vmatpush1.msra.mxu0 0.0
    %72 = vmatprep.subr.mxu0 0.0
    %73 = vmatpush1.msra.mxu0 0.0
    %74 = vmatprep.subr.mxu0 0.0
    %75 = vmatpush1.msra.mxu0 0.0
    %76 = vmatprep.subr.mxu0 0.0
    %77 = vmatpush1.msra.mxu0 0.0
    %78 = vmatprep.subr.mxu0 0.0
    %79 = vmatpush1.msra.mxu0 0.0
    %80 = vmatprep.subr.mxu0 0.0
    %81 = vmatpush1.msra.mxu0 0.0
    %82 = vmatprep.subr.mxu0 0.0
    %83 = vmatpush1.msra.mxu0 0.0
    %84 = vmatprep.subr.mxu0 0.0
    %85 = vmatpush1.msra.mxu0 0.0
    %86 = vmatprep.subr.mxu0 0.0
    %87 = vmatpush1.msra.mxu0 0.0
    %88 = vmatprep.subr.mxu0 0.0
    %89 = vmatpush1.msra.mxu0 0.0
    %90 = vmatprep.subr.mxu0 0.0
    %91 = vmatpush1.msra.mxu0 0.0
    %92 = vmatprep.subr.mxu0 0.0
    %93 = vmatpush1.msra.mxu0 0.0
    %94 = vmatprep.subr.mxu0 0.0
    %95 = vmatpush1.msra.mxu0 0.0
    %96 = vmatprep.subr.mxu0 0.0
    %97 = vmatpush1.msra.mxu0 0.0
    %98 = vmatprep.subr.mxu0 0.0
    %99 = vmatpush1.msra.mxu0 0.0
    %100 = vmatprep.subr.mxu0 0.0
    %101 = vmatpush1.msra.mxu0 0.0
    %102 = vmatprep.subr.mxu0 0.0
    %103 = vmatpush1.msra.mxu0 0.0
    %104 = vmatprep.subr.mxu0 0.0
    %105 = vmatpush1.msra.mxu0 0.0
    %106 = vmatprep.subr.mxu0 0.0
    %107 = vmatpush1.msra.mxu0 0.0
    %108 = vmatprep.subr.mxu0 0.0
    %109 = vmatpush1.msra.mxu0 0.0
    %110 = vmatprep.subr.mxu0 0.0
    %111 = vmatpush1.msra.mxu0 0.0
    %112 = vmatprep.subr.mxu0 0.0
    %113 = vmatpush1.msra.mxu0 0.0
    %114 = vmatprep.subr.mxu0 0.0
    %115 = vmatpush1.msra.mxu0 0.0
    %116 = vmatprep.subr.mxu0 0.0
    %117 = vmatpush1.msra.mxu0 0.0
    %118 = vmatprep.subr.mxu0 0.0
    %119 = vmatpush1.msra.mxu0 0.0
    %120 = vmatprep.subr.mxu0 0.0
    %121 = vmatpush1.msra.mxu0 0.0
    %122 = vmatprep.mubr.f32.mxu0 0.0
    %123 = vmatmul.mubr.f32.gmra.mrb[0].mxu0 %v56
    %v124 = vpop.f32.mrb[0].mxu0
    %v125 = vadd.f32 %v52, %v124
    %v126 = vpop.f32.mrb[0].mxu0
    %127 = vdwg.mxu0
    %128 = vst [vmem:[#allocation7] sm:$0xff] %v125
    // Predicated region
    $region22: #{tpu_custom_call.1} parent=1 // pred_check
      _
    $region23: #{tpu_custom_call.1} parent=1 // pred_check_branch
      %130 = sbr.rel (0) target = $region25
    $region24: #{tpu_custom_call.1} parent=1 // pred_region
      %s132 = ssub.s32 128, 128
      %133 = vsyncadd [#allocation4], %s132
      %s135 = sshll.u32 [#allocation7], 4
      %s136 = int_to_ptr.vmem [resolvable:$true] %s135
      %138 = dma.vmem_to_hbm [thread:$0]  %s136, 128, %s3, [#allocation4]
    $region25: #{tpu_custom_call.1} parent=1 // pred_fallthru
      _
    // Predicated region
    $region26: #{tpu_custom_call.1} parent=1 // pred_check
      _
    $region27: #{tpu_custom_call.1} parent=1 // pred_check_branch
      %140 = sbr.rel (0) target = $region29
    $region28: #{tpu_custom_call.1} parent=1 // pred_region
      %141 = dma.done [#allocation4], 128
    $region29: #{tpu_custom_call.1} parent=1 // pred_fallthru
      _
    %142 = vsyncpa [#allocation3], 1
    %143 = vsyncpa [#allocation6], 1
    %144 = vsyncpa [#allocation4], 1

</llo_original>
